<compile_context>
chip_gen: v5e
topology: v5e:2x2
jax: 0.10.0
libtpu: 0.0.40
codegen_flags: <defaults>
</compile_context>

<pallas_src>
import functools

import jax
import jax.numpy as jnp
from jax.experimental import pallas as pl
from jax.experimental.pallas import tpu as pltpu


# ----------------------------- config (small, synthetic) -----------------------------
SEQ = 8
HIDDEN = 128
NUM_HEADS = 4
NUM_KV_HEADS = 2
HEAD_DIM = HIDDEN // NUM_HEADS          # 32
INTERMEDIATE = 256
RMS_EPS = 1e-6
ROPE_THETA = 10000.0

Q_SIZE = NUM_HEADS * HEAD_DIM           # 128
KV_SIZE = NUM_KV_HEADS * HEAD_DIM       # 64
GROUP = NUM_HEADS // NUM_KV_HEADS       # 2 query heads per KV head

# Extended QKV weight column layout: [q | q_rot | k | k_rot | v]
OFF_Q = 0
OFF_QROT = Q_SIZE
OFF_K = 2 * Q_SIZE
OFF_KROT = 2 * Q_SIZE + KV_SIZE
OFF_V = 2 * Q_SIZE + 2 * KV_SIZE
QKV_EXT_COLS = 2 * Q_SIZE + 2 * KV_SIZE + KV_SIZE      # 448


# ----------------------------- helpers -----------------------------
def _full_spec(shape):
    nd = len(shape)
    return pl.BlockSpec(shape, lambda *_, _nd=nd: (0,) * _nd)


# ----------------------------- fused decoder-layer kernel -----------------------------
def decoder_layer_kernel(*refs, eps, has_residual):
    if has_residual:
        (h_ref, res_ref, ln1_ref, wqkv_ref, cosq_ref, sinq_ref, cosk_ref, sink_ref,
         wo_ref, ln2_ref, wgu_ref, wd_ref, out_ref, res_out_ref, attn_scr) = refs
    else:
        (h_ref, ln1_ref, wqkv_ref, cosq_ref, sinq_ref, cosk_ref, sink_ref,
         wo_ref, ln2_ref, wgu_ref, wd_ref, out_ref, res_out_ref, attn_scr) = refs
        res_ref = None

    f32 = jnp.float32
    bf16 = jnp.bfloat16
    S = h_ref.shape[0]
    D = HEAD_DIM

    h = h_ref[...]                                    # [S, H] f32
    x = h + res_ref[...] if has_residual else h       # fused residual add (or residual := hidden)

    # ---- input RMSNorm (f32 elementwise, v5e-safe) ----
    var = jnp.mean(x * x, axis=-1, keepdims=True)
    normed = (x * jax.lax.rsqrt(var + eps) * ln1_ref[...]).astype(bf16)

    # ---- fused QKV (+ rotate-half partner) projection: one bf16 MXU matmul ----
    qkv = jnp.dot(normed, wqkv_ref[...], preferred_element_type=f32)   # [S, 448] f32
    q = qkv[:, OFF_Q:OFF_Q + Q_SIZE]
    q_rot = qkv[:, OFF_QROT:OFF_QROT + Q_SIZE]
    k = qkv[:, OFF_K:OFF_K + KV_SIZE]
    k_rot = qkv[:, OFF_KROT:OFF_KROT + KV_SIZE]
    v = qkv[:, OFF_V:OFF_V + KV_SIZE]

    # ---- full-width neox RoPE: two full-lane FMAs (attention scale folded into cos_q/sin_q) ----
    q_rope = q * cosq_ref[...] + q_rot * sinq_ref[...]     # [S, 128] f32 (already *scale)
    k_rope = k * cosk_ref[...] + k_rot * sink_ref[...]     # [S, 64]  f32

    # ---- causal GQA attention, batched per KV group ----
    # Stacked rows are head-major: rows [0,S) = first head of the group, [S,2S) = second.
    qpos = jax.lax.broadcasted_iota(jnp.int32, (GROUP * S, S), 0) % S
    kpos = jax.lax.broadcasted_iota(jnp.int32, (GROUP * S, S), 1)
    causal = kpos <= qpos

    for hk in range(NUM_KV_HEADS):
        k_h = k_rope[:, hk * D:(hk + 1) * D].astype(bf16)               # [S, D]
        v_h = v[:, hk * D:(hk + 1) * D].astype(bf16)                    # [S, D]
        q_stack = jnp.concatenate(
            [q_rope[:, (hk * GROUP + g) * D:(hk * GROUP + g + 1) * D] for g in range(GROUP)],
            axis=0).astype(bf16)                                        # [GROUP*S, D]

        s = jax.lax.dot_general(q_stack, k_h, (((1,), (1,)), ((), ())),
                                preferred_element_type=f32)             # [GROUP*S, S]
        s = jnp.where(causal, s, -1e30)
        m = jnp.max(s, axis=-1, keepdims=True)
        p = jnp.exp(s - m)
        p = p * pl.reciprocal(jnp.sum(p, axis=-1, keepdims=True), approx=True)  # EUP slot
        o = jnp.dot(p.astype(bf16), v_h, preferred_element_type=f32)    # [GROUP*S, D]

        # scatter head results into lane slices of the [S, Q_SIZE] scratch (no concat chain)
        for g in range(GROUP):
            hq = hk * GROUP + g
            attn_scr[:, hq * D:(hq + 1) * D] = o[g * S:(g + 1) * S, :]

    attn = attn_scr[...].astype(bf16)                                    # [S, 128] lane-dense

    # ---- output projection ----
    attn_out = jnp.dot(attn, wo_ref[...], preferred_element_type=f32)    # [S, H]

    # ---- post-attention residual add + RMSNorm (fused) ----
    res2 = attn_out + x
    res_out_ref[...] = res2
    var2 = jnp.mean(res2 * res2, axis=-1, keepdims=True)
    mlp_in = (res2 * jax.lax.rsqrt(var2 + eps) * ln2_ref[...]).astype(bf16)

    # ---- fused MLP (single shot, no reduction grid) ----
    gu = jnp.dot(mlp_in, wgu_ref[...], preferred_element_type=f32)       # [S, 2*I]
    gate = gu[:, :INTERMEDIATE]
    up = gu[:, INTERMEDIATE:]
    act = (gate * jax.nn.sigmoid(gate)) * up                             # SiluAndMul, f32
    out_ref[...] = jnp.dot(act.astype(bf16), wd_ref[...],
                           preferred_element_type=f32).astype(out_ref.dtype)


# ----------------------------- rotary cache (hoisted to model level) -----------------------------
def build_rope_cache(positions):
    half = HEAD_DIM // 2
    inv_freq = 1.0 / (ROPE_THETA ** (jnp.arange(0, HEAD_DIM, 2, dtype=jnp.float32) / HEAD_DIM))
    freqs = positions.astype(jnp.float32)[:, None] * inv_freq[None, :]   # [S, D/2]
    cos = jnp.cos(freqs)
    sin = jnp.sin(freqs)
    scale = HEAD_DIM ** -0.5
    # Pre-tiled full-width tables; attention scale folded into the q tables.
    cos_q = jnp.tile(cos, (1, Q_SIZE // half)) * scale                   # [S, Q_SIZE]
    sin_q = jnp.tile(sin, (1, Q_SIZE // half)) * scale
    cos_k = jnp.tile(cos, (1, KV_SIZE // half))                          # [S, KV_SIZE]
    sin_k = jnp.tile(sin, (1, KV_SIZE // half))
    return cos_q, sin_q, cos_k, sin_k


# ----------------------------- decoder layer forward -----------------------------
def llama_decoder_layer(positions, hidden_states, residual, params, rope_cache=None):
    S, H = hidden_states.shape
    f32 = jnp.float32
    if rope_cache is None:
        rope_cache = build_rope_cache(positions)
    cos_q, sin_q, cos_k, sin_k = rope_cache

    has_residual = residual is not None
    inputs = [hidden_states]
    if has_residual:
        inputs.append(residual)          # no dead residual DMA on the first layer
    inputs += [params['ln1'], params['wqkv_ext'], cos_q, sin_q, cos_k, sin_k,
               params['wo_t'], params['ln2'], params['wgu_t'], params['wd_t']]

    kern = functools.partial(decoder_layer_kernel, eps=RMS_EPS, has_residual=has_residual)

    gqa_rows = GROUP * S
    flops = (2 * S * H * QKV_EXT_COLS                       # QKV (+ rotate-half partner)
             + 6 * S * Q_SIZE                               # RoPE FMAs (approx)
             + NUM_KV_HEADS * 2 * (2 * gqa_rows * S * HEAD_DIM)   # scores + PV
             + 2 * S * Q_SIZE * H                           # O proj
             + 2 * S * H * 2 * INTERMEDIATE                 # gate/up
             + 3 * S * INTERMEDIATE                         # SiLU * mul
             + 2 * S * INTERMEDIATE * H)                    # down proj
    transcendentals = NUM_HEADS * S * S + S * INTERMEDIATE + 4 * S
    bytes_accessed = (2 * (H * QKV_EXT_COLS + Q_SIZE * H
                           + H * 2 * INTERMEDIATE + INTERMEDIATE * H)      # bf16 weights
                      + 4 * S * H * (3 + (1 if has_residual else 0))       # f32 activations
                      + 4 * S * (2 * Q_SIZE + 2 * KV_SIZE)                 # rope tables
                      + 4 * 2 * H)                                         # ln weights

    hidden_out, new_residual = pl.pallas_call(
        kern,
        out_shape=(jax.ShapeDtypeStruct((S, H), f32),   # MLP output (hidden_states)
                   jax.ShapeDtypeStruct((S, H), f32)),  # residual (kept in f32)
        grid=(1,),
        in_specs=[_full_spec(a.shape) for a in inputs],
        out_specs=(_full_spec((S, H)), _full_spec((S, H))),
        scratch_shapes=[pltpu.VMEM((S, Q_SIZE), f32)],  # attention-output assembly buffer
        compiler_params=pltpu.CompilerParams(dimension_semantics=("arbitrary",)),
        cost_estimate=pl.CostEstimate(flops=flops, transcendentals=transcendentals,
                                      bytes_accessed=bytes_accessed),
    )(*inputs)
    return hidden_out, new_residual


# ----------------------------- parameter init -----------------------------
def init_params(key):
    ks = jax.random.split(key, 4)
    f32, bf16 = jnp.float32, jnp.bfloat16
    scale = 0.05
    # PyTorch Linear stores weight as [out, in]; pre-transpose to [in, out].
    w_qkv = jax.random.normal(ks[0], (Q_SIZE + 2 * KV_SIZE, HIDDEN), f32) * scale
    w_o = jax.random.normal(ks[1], (HIDDEN, Q_SIZE), f32) * scale
    w_gate_up = jax.random.normal(ks[2], (2 * INTERMEDIATE, HIDDEN), f32) * scale
    w_down = jax.random.normal(ks[3], (HIDDEN, INTERMEDIATE), f32) * scale

    wqkv_t = w_qkv.T                                    # [H, Q + 2*KV]
    wq = wqkv_t[:, :Q_SIZE]
    wk = wqkv_t[:, Q_SIZE:Q_SIZE + KV_SIZE]
    wv = wqkv_t[:, Q_SIZE + KV_SIZE:]

    def rot_cols(w, n_heads):
        # Per-head "rotate-half" column permutation (with sign), folded into the weight:
        # (x @ w_rot) == rotate_half(x @ w) exactly (negation is exact).
        half = HEAD_DIM // 2
        blocks = []
        for h in range(n_heads):
            blk = w[:, h * HEAD_DIM:(h + 1) * HEAD_DIM]
            blocks.append(jnp.concatenate([-blk[:, half:], blk[:, :half]], axis=-1))
        return jnp.concatenate(blocks, axis=-1)

    wqkv_ext = jnp.concatenate(
        [wq, rot_cols(wq, NUM_HEADS), wk, rot_cols(wk, NUM_KV_HEADS), wv], axis=-1)
    assert wqkv_ext.shape == (HIDDEN, QKV_EXT_COLS)

    return {
        'ln1': jnp.ones((1, HIDDEN), f32),              # RMSNorm weights init to ones
        'ln2': jnp.ones((1, HIDDEN), f32),
        'wqkv_ext': wqkv_ext.astype(bf16),              # [H, 448] = [q | q_rot | k | k_rot | v]
        'wo_t': w_o.T.astype(bf16),                     # [Q_SIZE, H]
        'wgu_t': w_gate_up.T.astype(bf16),              # [H, 2*I]  (gate cols, then up cols)
        'wd_t': w_down.T.astype(bf16),                  # [I, H]
    }


# ----------------------------- main -----------------------------
if __name__ == "__main__":
    key = jax.random.PRNGKey(0)
    kp, kx = jax.random.split(key)
    params = init_params(kp)

    positions = jnp.arange(SEQ, dtype=jnp.int32)                       # [8]
    hidden_states = jax.random.normal(kx, (SEQ, HIDDEN), jnp.float32)  # [8, 128]
    rope_cache = build_rope_cache(positions)                           # hoisted once

    # First layer (residual=None path), then chain once more to exercise the
    # residual-carrying path as well.
    out1, res1 = llama_decoder_layer(positions, hidden_states, None, params, rope_cache)
    out2, res2 = llama_decoder_layer(positions, out1, res1, params, rope_cache)
    jax.block_until_ready((out1, res1, out2, res2))

    assert out1.shape == (SEQ, HIDDEN) and res1.shape == (SEQ, HIDDEN)
    assert out2.shape == (SEQ, HIDDEN) and res2.shape == (SEQ, HIDDEN)
    for t in (out1, res1, out2, res2):
        assert bool(jnp.all(jnp.isfinite(t)))
    print("KERNEL_OK")
</pallas_src>

<mosaic_0001>
module attributes {stable_mosaic.version = 11 : i64} {
  func.func @decoder_layer_kernel(%arg0: i32, %arg1: memref<8x128xf32, #tpu.memory_space<vmem>>, %arg2: memref<1x128xf32, #tpu.memory_space<vmem>>, %arg3: memref<128x448xbf16, #tpu.memory_space<vmem>>, %arg4: memref<8x128xf32, #tpu.memory_space<vmem>>, %arg5: memref<8x128xf32, #tpu.memory_space<vmem>>, %arg6: memref<8x64xf32, #tpu.memory_space<vmem>>, %arg7: memref<8x64xf32, #tpu.memory_space<vmem>>, %arg8: memref<128x128xbf16, #tpu.memory_space<vmem>>, %arg9: memref<1x128xf32, #tpu.memory_space<vmem>>, %arg10: memref<128x512xbf16, #tpu.memory_space<vmem>>, %arg11: memref<256x128xbf16, #tpu.memory_space<vmem>>, %arg12: memref<8x128xf32, #tpu.memory_space<vmem>>, %arg13: memref<8x128xf32, #tpu.memory_space<vmem>>, %arg14: memref<8x128xf32, #tpu.memory_space<vmem>>) attributes {dimension_semantics = [#tpu.dimension_semantics<arbitrary>], iteration_bounds = array<i64: 1>, scalar_prefetch = 0 : i64, scratch_operands = 1 : i64, tpu.core_type = #tpu.core_type<tc>, window_params = [{pipeline_mode = #tpu.pipeline_mode<synchronous>, transform_indices = @transform_0, window_bounds = array<i64: 8, 128>}, {pipeline_mode = #tpu.pipeline_mode<synchronous>, transform_indices = @transform_1, window_bounds = array<i64: 1, 128>}, {pipeline_mode = #tpu.pipeline_mode<synchronous>, transform_indices = @transform_2, window_bounds = array<i64: 128, 448>}, {pipeline_mode = #tpu.pipeline_mode<synchronous>, transform_indices = @transform_3, window_bounds = array<i64: 8, 128>}, {pipeline_mode = #tpu.pipeline_mode<synchronous>, transform_indices = @transform_4, window_bounds = array<i64: 8, 128>}, {pipeline_mode = #tpu.pipeline_mode<synchronous>, transform_indices = @transform_5, window_bounds = array<i64: 8, 64>}, {pipeline_mode = #tpu.pipeline_mode<synchronous>, transform_indices = @transform_6, window_bounds = array<i64: 8, 64>}, {pipeline_mode = #tpu.pipeline_mode<synchronous>, transform_indices = @transform_7, window_bounds = array<i64: 128, 128>}, {pipeline_mode = #tpu.pipeline_mode<synchronous>, transform_indices = @transform_8, window_bounds = array<i64: 1, 128>}, {pipeline_mode = #tpu.pipeline_mode<synchronous>, transform_indices = @transform_9, window_bounds = array<i64: 128, 512>}, {pipeline_mode = #tpu.pipeline_mode<synchronous>, transform_indices = @transform_10, window_bounds = array<i64: 256, 128>}, {pipeline_mode = #tpu.pipeline_mode<synchronous>, transform_indices = @transform_11, window_bounds = array<i64: 8, 128>}, {pipeline_mode = #tpu.pipeline_mode<synchronous>, transform_indices = @transform_12, window_bounds = array<i64: 8, 128>}]} {
    %c0 = arith.constant 0 : index
    %c0_0 = arith.constant 0 : index
    %0 = vector.load %arg1[%c0, %c0_0] : memref<8x128xf32, #tpu.memory_space<vmem>>, vector<8x128xf32>
    %1 = arith.mulf %0, %0 : vector<8x128xf32>
    %cst = arith.constant dense<0.000000e+00> : vector<8xf32>
    %2 = vector.multi_reduction <add>, %1, %cst [1] : vector<8x128xf32> to vector<8xf32>
    %3 = vector.shape_cast %2 : vector<8xf32> to vector<8x1xf32>
    %cst_1 = arith.constant 1.280000e+02 : f32
    %4 = vector.broadcast %cst_1 : f32 to vector<8x1xf32>
    %5 = arith.divf %3, %4 : vector<8x1xf32>
    %cst_2 = arith.constant 9.99999997E-7 : f32
    %6 = vector.broadcast %cst_2 : f32 to vector<8x1xf32>
    %7 = arith.addf %5, %6 : vector<8x1xf32>
    %8 = math.rsqrt %7 : vector<8x1xf32>
    %9 = vector.broadcast %8 : vector<8x1xf32> to vector<8x128xf32>
    %10 = arith.mulf %0, %9 : vector<8x128xf32>
    %c0_3 = arith.constant 0 : index
    %c0_4 = arith.constant 0 : index
    %11 = vector.load %arg2[%c0_3, %c0_4] : memref<1x128xf32, #tpu.memory_space<vmem>>, vector<1x128xf32>
    %12 = vector.broadcast %11 : vector<1x128xf32> to vector<8x128xf32>
    %13 = arith.mulf %10, %12 : vector<8x128xf32>
    %14 = arith.truncf %13 : vector<8x128xf32> to vector<8x128xbf16>
    %c0_5 = arith.constant 0 : index
    %c0_6 = arith.constant 0 : index
    %15 = vector.load %arg3[%c0_5, %c0_6] : memref<128x448xbf16, #tpu.memory_space<vmem>>, vector<128x448xbf16>
    %cst_7 = arith.constant dense<0.000000e+00> : vector<8x448xf32>
    %16 = tpu.matmul %14, %15, %cst_7 {dimension_numbers = #tpu.dot_dimension_numbers<[1], [0], [0], [1], [0, 0, 1, 1], [], []>} : vector<8x128xbf16>, vector<128x448xbf16>, vector<8x448xf32> -> vector<8x448xf32>
    %17 = vector.extract_strided_slice %16 {offsets = [0, 0], sizes = [8, 128], strides = [1, 1]} : vector<8x448xf32> to vector<8x128xf32>
    %18 = vector.extract_strided_slice %16 {offsets = [0, 128], sizes = [8, 128], strides = [1, 1]} : vector<8x448xf32> to vector<8x128xf32>
    %19 = vector.extract_strided_slice %16 {offsets = [0, 256], sizes = [8, 64], strides = [1, 1]} : vector<8x448xf32> to vector<8x64xf32>
    %20 = vector.extract_strided_slice %16 {offsets = [0, 320], sizes = [8, 64], strides = [1, 1]} : vector<8x448xf32> to vector<8x64xf32>
    %21 = vector.extract_strided_slice %16 {offsets = [0, 384], sizes = [8, 64], strides = [1, 1]} : vector<8x448xf32> to vector<8x64xf32>
    %c0_8 = arith.constant 0 : index
    %c0_9 = arith.constant 0 : index
    %22 = vector.load %arg4[%c0_8, %c0_9] : memref<8x128xf32, #tpu.memory_space<vmem>>, vector<8x128xf32>
    %23 = arith.mulf %17, %22 : vector<8x128xf32>
    %c0_10 = arith.constant 0 : index
    %c0_11 = arith.constant 0 : index
    %24 = vector.load %arg5[%c0_10, %c0_11] : memref<8x128xf32, #tpu.memory_space<vmem>>, vector<8x128xf32>
    %25 = arith.mulf %18, %24 : vector<8x128xf32>
    %26 = arith.addf %23, %25 : vector<8x128xf32>
    %c0_12 = arith.constant 0 : index
    %c0_13 = arith.constant 0 : index
    %27 = vector.load %arg6[%c0_12, %c0_13] : memref<8x64xf32, #tpu.memory_space<vmem>>, vector<8x64xf32>
    %28 = arith.mulf %19, %27 : vector<8x64xf32>
    %c0_14 = arith.constant 0 : index
    %c0_15 = arith.constant 0 : index
    %29 = vector.load %arg7[%c0_14, %c0_15] : memref<8x64xf32, #tpu.memory_space<vmem>>, vector<8x64xf32>
    %30 = arith.mulf %20, %29 : vector<8x64xf32>
    %31 = arith.addf %28, %30 : vector<8x64xf32>
    %32 = tpu.iota {dimensions = array<i32: 0>} : vector<16x8xi32>
    %c8_i32 = arith.constant 8 : i32
    %c0_i32 = arith.constant 0 : i32
    %33 = arith.cmpi eq, %c8_i32, %c0_i32 : i32
    %c1_i32 = arith.constant 1 : i32
    %34 = arith.select %33, %c1_i32, %c8_i32 : i32
    %35 = vector.broadcast %34 : i32 to vector<16x8xi32>
    %36 = arith.remsi %32, %35 : vector<16x8xi32>
    %c0_i32_16 = arith.constant 0 : i32
    %37 = vector.broadcast %c0_i32_16 : i32 to vector<16x8xi32>
    %38 = arith.cmpi ne, %36, %37 : vector<16x8xi32>
    %c0_i32_17 = arith.constant 0 : i32
    %39 = vector.broadcast %c0_i32_17 : i32 to vector<16x8xi32>
    %40 = arith.cmpi slt, %36, %39 : vector<16x8xi32>
    %c0_i32_18 = arith.constant 0 : i32
    %41 = arith.cmpi slt, %34, %c0_i32_18 : i32
    %42 = vector.broadcast %41 : i1 to vector<16x8xi1>
    %43 = vector.broadcast %42 : vector<16x8xi1> to vector<16x8xi1>
    %44 = arith.xori %40, %43 : vector<16x8xi1>
    %45 = arith.andi %44, %38 : vector<16x8xi1>
    %46 = vector.broadcast %34 : i32 to vector<16x8xi32>
    %47 = arith.addi %36, %46 : vector<16x8xi32>
    %48 = arith.select %45, %47, %36 : vector<16x8xi1>, vector<16x8xi32>
    %49 = tpu.iota {dimensions = array<i32: 1>} : vector<16x8xi32>
    %50 = arith.cmpi sle, %49, %48 : vector<16x8xi32>
    %51 = vector.extract_strided_slice %31 {offsets = [0, 0], sizes = [8, 32], strides = [1, 1]} : vector<8x64xf32> to vector<8x32xf32>
    %52 = arith.truncf %51 : vector<8x32xf32> to vector<8x32xbf16>
    %53 = vector.extract_strided_slice %21 {offsets = [0, 0], sizes = [8, 32], strides = [1, 1]} : vector<8x64xf32> to vector<8x32xf32>
    %54 = arith.truncf %53 : vector<8x32xf32> to vector<8x32xbf16>
    %55 = vector.extract_strided_slice %26 {offsets = [0, 0], sizes = [8, 32], strides = [1, 1]} : vector<8x128xf32> to vector<8x32xf32>
    %56 = vector.extract_strided_slice %26 {offsets = [0, 32], sizes = [8, 32], strides = [1, 1]} : vector<8x128xf32> to vector<8x32xf32>
    %57 = tpu.concatenate %55, %56 in 0 : vector<8x32xf32>, vector<8x32xf32> -> vector<16x32xf32>
    %58 = arith.truncf %57 : vector<16x32xf32> to vector<16x32xbf16>
    %cst_19 = arith.constant dense<0.000000e+00> : vector<16x8xf32>
    %59 = tpu.matmul %58, %52, %cst_19 {dimension_numbers = #tpu.dot_dimension_numbers<[1], [1], [0], [0], [0, 0, 1, 0], [], []>} : vector<16x32xbf16>, vector<8x32xbf16>, vector<16x8xf32> -> vector<16x8xf32>
    %cst_20 = arith.constant -1.000000e+30 : f32
    %60 = vector.broadcast %cst_20 : f32 to vector<16x8xf32>
    %61 = arith.select %50, %59, %60 : vector<16x8xi1>, vector<16x8xf32>
    %cst_21 = arith.constant dense<0xFF800000> : vector<16xf32>
    %62 = vector.multi_reduction <maximumf>, %61, %cst_21 [1] : vector<16x8xf32> to vector<16xf32>
    %63 = vector.shape_cast %62 : vector<16xf32> to vector<16x1xf32>
    %64 = vector.broadcast %63 : vector<16x1xf32> to vector<16x8xf32>
    %65 = arith.subf %61, %64 : vector<16x8xf32>
    %66 = math.exp %65 : vector<16x8xf32>
    %cst_22 = arith.constant dense<0.000000e+00> : vector<16xf32>
    %67 = vector.multi_reduction <add>, %66, %cst_22 [1] : vector<16x8xf32> to vector<16xf32>
    %68 = vector.shape_cast %67 : vector<16xf32> to vector<16x1xf32>
    %69 = tpu.reciprocal %68 {approx = true} : vector<16x1xf32> -> vector<16x1xf32>
    %70 = vector.broadcast %69 : vector<16x1xf32> to vector<16x8xf32>
    %71 = arith.mulf %66, %70 : vector<16x8xf32>
    %72 = arith.truncf %71 : vector<16x8xf32> to vector<16x8xbf16>
    %cst_23 = arith.constant dense<0.000000e+00> : vector<16x32xf32>
    %73 = tpu.matmul %72, %54, %cst_23 {dimension_numbers = #tpu.dot_dimension_numbers<[1], [0], [0], [1], [0, 0, 1, 1], [], []>} : vector<16x8xbf16>, vector<8x32xbf16>, vector<16x32xf32> -> vector<16x32xf32>
    %74 = vector.extract_strided_slice %73 {offsets = [0, 0], sizes = [8, 32], strides = [1, 1]} : vector<16x32xf32> to vector<8x32xf32>
    %c0_24 = arith.constant 0 : index
    %c0_25 = arith.constant 0 : index
    %75 = vector.load %arg14[%c0_24, %c0_25] : memref<8x128xf32, #tpu.memory_space<vmem>>, vector<8x32xf32>
    tpu.vector_store %arg14[%c0_24, %c0_25], %74 {strides = array<i32>} : memref<8x128xf32, #tpu.memory_space<vmem>>, vector<8x32xf32>,
    %76 = vector.extract_strided_slice %73 {offsets = [8, 0], sizes = [8, 32], strides = [1, 1]} : vector<16x32xf32> to vector<8x32xf32>
    %c0_26 = arith.constant 0 : index
    %c32 = arith.constant 32 : index
    %77 = vector.load %arg14[%c0_26, %c32] : memref<8x128xf32, #tpu.memory_space<vmem>>, vector<8x32xf32>
    tpu.vector_store %arg14[%c0_26, %c32], %76 {strides = array<i32>} : memref<8x128xf32, #tpu.memory_space<vmem>>, vector<8x32xf32>,
    %78 = vector.extract_strided_slice %31 {offsets = [0, 32], sizes = [8, 32], strides = [1, 1]} : vector<8x64xf32> to vector<8x32xf32>
    %79 = arith.truncf %78 : vector<8x32xf32> to vector<8x32xbf16>
    %80 = vector.extract_strided_slice %21 {offsets = [0, 32], sizes = [8, 32], strides = [1, 1]} : vector<8x64xf32> to vector<8x32xf32>
    %81 = arith.truncf %80 : vector<8x32xf32> to vector<8x32xbf16>
    %82 = vector.extract_strided_slice %26 {offsets = [0, 64], sizes = [8, 32], strides = [1, 1]} : vector<8x128xf32> to vector<8x32xf32>
    %83 = vector.extract_strided_slice %26 {offsets = [0, 96], sizes = [8, 32], strides = [1, 1]} : vector<8x128xf32> to vector<8x32xf32>
    %84 = tpu.concatenate %82, %83 in 0 : vector<8x32xf32>, vector<8x32xf32> -> vector<16x32xf32>
    %85 = arith.truncf %84 : vector<16x32xf32> to vector<16x32xbf16>
    %cst_27 = arith.constant dense<0.000000e+00> : vector<16x8xf32>
    %86 = tpu.matmul %85, %79, %cst_27 {dimension_numbers = #tpu.dot_dimension_numbers<[1], [1], [0], [0], [0, 0, 1, 0], [], []>} : vector<16x32xbf16>, vector<8x32xbf16>, vector<16x8xf32> -> vector<16x8xf32>
    %cst_28 = arith.constant -1.000000e+30 : f32
    %87 = vector.broadcast %cst_28 : f32 to vector<16x8xf32>
    %88 = arith.select %50, %86, %87 : vector<16x8xi1>, vector<16x8xf32>
    %cst_29 = arith.constant dense<0xFF800000> : vector<16xf32>
    %89 = vector.multi_reduction <maximumf>, %88, %cst_29 [1] : vector<16x8xf32> to vector<16xf32>
    %90 = vector.shape_cast %89 : vector<16xf32> to vector<16x1xf32>
    %91 = vector.broadcast %90 : vector<16x1xf32> to vector<16x8xf32>
    %92 = arith.subf %88, %91 : vector<16x8xf32>
    %93 = math.exp %92 : vector<16x8xf32>
    %cst_30 = arith.constant dense<0.000000e+00> : vector<16xf32>
    %94 = vector.multi_reduction <add>, %93, %cst_30 [1] : vector<16x8xf32> to vector<16xf32>
    %95 = vector.shape_cast %94 : vector<16xf32> to vector<16x1xf32>
    %96 = tpu.reciprocal %95 {approx = true} : vector<16x1xf32> -> vector<16x1xf32>
    %97 = vector.broadcast %96 : vector<16x1xf32> to vector<16x8xf32>
    %98 = arith.mulf %93, %97 : vector<16x8xf32>
    %99 = arith.truncf %98 : vector<16x8xf32> to vector<16x8xbf16>
    %cst_31 = arith.constant dense<0.000000e+00> : vector<16x32xf32>
    %100 = tpu.matmul %99, %81, %cst_31 {dimension_numbers = #tpu.dot_dimension_numbers<[1], [0], [0], [1], [0, 0, 1, 1], [], []>} : vector<16x8xbf16>, vector<8x32xbf16>, vector<16x32xf32> -> vector<16x32xf32>
    %101 = vector.extract_strided_slice %100 {offsets = [0, 0], sizes = [8, 32], strides = [1, 1]} : vector<16x32xf32> to vector<8x32xf32>
    %c0_32 = arith.constant 0 : index
    %c64 = arith.constant 64 : index
    %102 = vector.load %arg14[%c0_32, %c64] : memref<8x128xf32, #tpu.memory_space<vmem>>, vector<8x32xf32>
    tpu.vector_store %arg14[%c0_32, %c64], %101 {strides = array<i32>} : memref<8x128xf32, #tpu.memory_space<vmem>>, vector<8x32xf32>,
    %103 = vector.extract_strided_slice %100 {offsets = [8, 0], sizes = [8, 32], strides = [1, 1]} : vector<16x32xf32> to vector<8x32xf32>
    %c0_33 = arith.constant 0 : index
    %c96 = arith.constant 96 : index
    %104 = vector.load %arg14[%c0_33, %c96] : memref<8x128xf32, #tpu.memory_space<vmem>>, vector<8x32xf32>
    tpu.vector_store %arg14[%c0_33, %c96], %103 {strides = array<i32>} : memref<8x128xf32, #tpu.memory_space<vmem>>, vector<8x32xf32>,
    %c0_34 = arith.constant 0 : index
    %c0_35 = arith.constant 0 : index
    %105 = vector.load %arg14[%c0_34, %c0_35] : memref<8x128xf32, #tpu.memory_space<vmem>>, vector<8x128xf32>
    %106 = arith.truncf %105 : vector<8x128xf32> to vector<8x128xbf16>
    %c0_36 = arith.constant 0 : index
    %c0_37 = arith.constant 0 : index
    %107 = vector.load %arg8[%c0_36, %c0_37] : memref<128x128xbf16, #tpu.memory_space<vmem>>, vector<128x128xbf16>
    %cst_38 = arith.constant dense<0.000000e+00> : vector<8x128xf32>
    %108 = tpu.matmul %106, %107, %cst_38 {dimension_numbers = #tpu.dot_dimension_numbers<[1], [0], [0], [1], [0, 0, 1, 1], [], []>} : vector<8x128xbf16>, vector<128x128xbf16>, vector<8x128xf32> -> vector<8x128xf32>
    %109 = arith.addf %108, %0 : vector<8x128xf32>
    %c0_39 = arith.constant 0 : index
    %c0_40 = arith.constant 0 : index
    %110 = vector.load %arg13[%c0_39, %c0_40] : memref<8x128xf32, #tpu.memory_space<vmem>>, vector<8x128xf32>
    tpu.vector_store %arg13[%c0_39, %c0_40], %109 {strides = array<i32>} : memref<8x128xf32, #tpu.memory_space<vmem>>, vector<8x128xf32>,
    %111 = arith.mulf %109, %109 : vector<8x128xf32>
    %cst_41 = arith.constant dense<0.000000e+00> : vector<8xf32>
    %112 = vector.multi_reduction <add>, %111, %cst_41 [1] : vector<8x128xf32> to vector<8xf32>
    %113 = vector.shape_cast %112 : vector<8xf32> to vector<8x1xf32>
    %cst_42 = arith.constant 1.280000e+02 : f32
    %114 = vector.broadcast %cst_42 : f32 to vector<8x1xf32>
    %115 = arith.divf %113, %114 : vector<8x1xf32>
    %cst_43 = arith.constant 9.99999997E-7 : f32
    %116 = vector.broadcast %cst_43 : f32 to vector<8x1xf32>
    %117 = arith.addf %115, %116 : vector<8x1xf32>
    %118 = math.rsqrt %117 : vector<8x1xf32>
    %119 = vector.broadcast %118 : vector<8x1xf32> to vector<8x128xf32>
    %120 = arith.mulf %109, %119 : vector<8x128xf32>
    %c0_44 = arith.constant 0 : index
    %c0_45 = arith.constant 0 : index
    %121 = vector.load %arg9[%c0_44, %c0_45] : memref<1x128xf32, #tpu.memory_space<vmem>>, vector<1x128xf32>
    %122 = vector.broadcast %121 : vector<1x128xf32> to vector<8x128xf32>
    %123 = arith.mulf %120, %122 : vector<8x128xf32>
    %124 = arith.truncf %123 : vector<8x128xf32> to vector<8x128xbf16>
    %c0_46 = arith.constant 0 : index
    %c0_47 = arith.constant 0 : index
    %125 = vector.load %arg10[%c0_46, %c0_47] : memref<128x512xbf16, #tpu.memory_space<vmem>>, vector<128x512xbf16>
    %cst_48 = arith.constant dense<0.000000e+00> : vector<8x512xf32>
    %126 = tpu.matmul %124, %125, %cst_48 {dimension_numbers = #tpu.dot_dimension_numbers<[1], [0], [0], [1], [0, 0, 1, 1], [], []>} : vector<8x128xbf16>, vector<128x512xbf16>, vector<8x512xf32> -> vector<8x512xf32>
    %127 = vector.extract_strided_slice %126 {offsets = [0, 0], sizes = [8, 256], strides = [1, 1]} : vector<8x512xf32> to vector<8x256xf32>
    %128 = vector.extract_strided_slice %126 {offsets = [0, 256], sizes = [8, 256], strides = [1, 1]} : vector<8x512xf32> to vector<8x256xf32>
    %129 = arith.negf %127 : vector<8x256xf32>
    %130 = math.exp %129 : vector<8x256xf32>
    %cst_49 = arith.constant 1.000000e+00 : f32
    %131 = vector.broadcast %cst_49 : f32 to vector<8x256xf32>
    %132 = arith.addf %131, %130 : vector<8x256xf32>
    %133 = arith.divf %131, %132 : vector<8x256xf32>
    %134 = arith.mulf %127, %133 : vector<8x256xf32>
    %135 = arith.mulf %134, %128 : vector<8x256xf32>
    %136 = arith.truncf %135 : vector<8x256xf32> to vector<8x256xbf16>
    %c0_50 = arith.constant 0 : index
    %c0_51 = arith.constant 0 : index
    %137 = vector.load %arg11[%c0_50, %c0_51] : memref<256x128xbf16, #tpu.memory_space<vmem>>, vector<256x128xbf16>
    %cst_52 = arith.constant dense<0.000000e+00> : vector<8x128xf32>
    %138 = tpu.matmul %136, %137, %cst_52 {dimension_numbers = #tpu.dot_dimension_numbers<[1], [0], [0], [1], [0, 0, 1, 1], [], []>} : vector<8x256xbf16>, vector<256x128xbf16>, vector<8x128xf32> -> vector<8x128xf32>
    %c0_53 = arith.constant 0 : index
    %c0_54 = arith.constant 0 : index
    %139 = vector.load %arg12[%c0_53, %c0_54] : memref<8x128xf32, #tpu.memory_space<vmem>>, vector<8x128xf32>
    tpu.vector_store %arg12[%c0_53, %c0_54], %138 {strides = array<i32>} : memref<8x128xf32, #tpu.memory_space<vmem>>, vector<8x128xf32>,
    return
  }
  func.func @transform_0(%arg0: i32) -> (i32, i32) {
    %c0_i32 = arith.constant 0 : i32
    %c0_i32_0 = arith.constant 0 : i32
    %c0_i32_1 = arith.constant 0 : i32
    return %c0_i32, %c0_i32_0 : i32, i32
  }
  func.func @transform_1(%arg0: i32) -> (i32, i32) {
    %c0_i32 = arith.constant 0 : i32
    %c0_i32_0 = arith.constant 0 : i32
    %c0_i32_1 = arith.constant 0 : i32
    return %c0_i32, %c0_i32_0 : i32, i32
  }
  func.func @transform_2(%arg0: i32) -> (i32, i32) {
    %c0_i32 = arith.constant 0 : i32
    %c0_i32_0 = arith.constant 0 : i32
    %c0_i32_1 = arith.constant 0 : i32
    return %c0_i32, %c0_i32_0 : i32, i32
  }
  func.func @transform_3(%arg0: i32) -> (i32, i32) {
    %c0_i32 = arith.constant 0 : i32
    %c0_i32_0 = arith.constant 0 : i32
    %c0_i32_1 = arith.constant 0 : i32
    return %c0_i32, %c0_i32_0 : i32, i32
  }
  func.func @transform_4(%arg0: i32) -> (i32, i32) {
    %c0_i32 = arith.constant 0 : i32
    %c0_i32_0 = arith.constant 0 : i32
    %c0_i32_1 = arith.constant 0 : i32
    return %c0_i32, %c0_i32_0 : i32, i32
  }
  func.func @transform_5(%arg0: i32) -> (i32, i32) {
    %c0_i32 = arith.constant 0 : i32
    %c0_i32_0 = arith.constant 0 : i32
    %c0_i32_1 = arith.constant 0 : i32
    return %c0_i32, %c0_i32_0 : i32, i32
  }
  func.func @transform_6(%arg0: i32) -> (i32, i32) {
    %c0_i32 = arith.constant 0 : i32
    %c0_i32_0 = arith.constant 0 : i32
    %c0_i32_1 = arith.constant 0 : i32
    return %c0_i32, %c0_i32_0 : i32, i32
  }
  func.func @transform_7(%arg0: i32) -> (i32, i32) {
    %c0_i32 = arith.constant 0 : i32
    %c0_i32_0 = arith.constant 0 : i32
    %c0_i32_1 = arith.constant 0 : i32
    return %c0_i32, %c0_i32_0 : i32, i32
  }
  func.func @transform_8(%arg0: i32) -> (i32, i32) {
    %c0_i32 = arith.constant 0 : i32
    %c0_i32_0 = arith.constant 0 : i32
    %c0_i32_1 = arith.constant 0 : i32
    return %c0_i32, %c0_i32_0 : i32, i32
  }
  func.func @transform_9(%arg0: i32) -> (i32, i32) {
    %c0_i32 = arith.constant 0 : i32
    %c0_i32_0 = arith.constant 0 : i32
    %c0_i32_1 = arith.constant 0 : i32
    return %c0_i32, %c0_i32_0 : i32, i32
  }
  func.func @transform_10(%arg0: i32) -> (i32, i32) {
    %c0_i32 = arith.constant 0 : i32
    %c0_i32_0 = arith.constant 0 : i32
    %c0_i32_1 = arith.constant 0 : i32
    return %c0_i32, %c0_i32_0 : i32, i32
  }
  func.func @transform_11(%arg0: i32) -> (i32, i32) {
    %c0_i32 = arith.constant 0 : i32
    %c0_i32_0 = arith.constant 0 : i32
    %c0_i32_1 = arith.constant 0 : i32
    return %c0_i32, %c0_i32_0 : i32, i32
  }
  func.func @transform_12(%arg0: i32) -> (i32, i32) {
    %c0_i32 = arith.constant 0 : i32
    %c0_i32_0 = arith.constant 0 : i32
    %c0_i32_1 = arith.constant 0 : i32
    return %c0_i32, %c0_i32_0 : i32, i32
  }
}

</mosaic_0001>

<llo_original>
// kernel: tpu_custom_call.1
$region0: #{tpu_custom_call.1}
  #allocation0 [shape = 'u32[]', space=smem, size = 0x4, offset = 0x4, fixed_abs, tag = 'smem constant byte address 0x4 - core index']
  #allocation1 [shape = 'u32[72,128]{1,0:T(1,128)}', space=vmem, size = 0x9000, scoped, tag = 'internal scratch']
  #allocation2 [shape = 'f32[8,128]{1,0:T(8,128)}', space=vmem, size = 0x1000, scoped, tag = 'scratch operand']
  %s0 = inlined_call_operand.vmem [shape: f32[8,128], index: 0, kind: input, shape index: {}]
  %s1 = inlined_call_operand.hbm [shape: f32[1,128], index: 1, kind: input, shape index: {}]
  %s2 = inlined_call_operand.vmem [shape: bf16[128,448], index: 2, kind: input, shape index: {}]
  %s3 = inlined_call_operand.vmem [shape: f32[8,128], index: 3, kind: input, shape index: {}]
  %s4 = inlined_call_operand.vmem [shape: f32[8,128], index: 4, kind: input, shape index: {}]
  %s5 = inlined_call_operand.vmem [shape: f32[8,64], index: 5, kind: input, shape index: {}]
  %s6 = inlined_call_operand.vmem [shape: f32[8,64], index: 6, kind: input, shape index: {}]
  %s7 = inlined_call_operand.vmem [shape: bf16[128,128], index: 7, kind: input, shape index: {}]
  %s8 = inlined_call_operand.hbm [shape: f32[1,128], index: 8, kind: input, shape index: {}]
  %s9 = inlined_call_operand.vmem [shape: bf16[128,512], index: 9, kind: input, shape index: {}]
  %s10 = inlined_call_operand.vmem [shape: bf16[256,128], index: 10, kind: input, shape index: {}]
  %s11 = inlined_call_operand.hbm [shape: f32[8,128], index: 11, kind: output, shape index: {0}]
  %s12 = inlined_call_operand.hbm [shape: f32[8,128], index: 12, kind: output, shape index: {1}]
  %13 = xla_tuple %s11, %s12
  %s14 = sld [smem:[#allocation0]]
  $region70: #{tpu_custom_call.1} parent=0
    _
  %s16 = ssub.s32 1, %s14
  %s17 = scalar_select 0, %s16, %s14
  $region1: #{tpu_custom_call.1} parent=0
    #allocation3 [shape = 'u8[512]{0}', space=vmem, size = 0x400, scoped, tag = 'input window, operand 1, single buffered']
    #allocation4 [shape = 's32[1]{0}', space=sflag, size = 0x4, scoped, tag = 'scoped memory for tpu_custom_call.1']
    #allocation5 [shape = 's32[1]{0}', space=sflag, size = 0x4, scoped, tag = 'scoped memory for tpu_custom_call.1']
    #allocation6 [shape = 'u8[512]{0}', space=vmem, size = 0x400, scoped, tag = 'input window, operand 8, single buffered']
    #allocation7 [shape = 's32[1]{0}', space=sflag, size = 0x4, scoped, tag = 'scoped memory for tpu_custom_call.1']
    #allocation8 [shape = 'u8[4096]{0}', space=vmem, size = 0x1000, scoped, tag = 'output window, operand 0, single buffered']
    #allocation9 [shape = 'u8[4096]{0}', space=vmem, size = 0x1000, scoped, tag = 'output window, operand 1, single buffered']
    #allocation10 [shape = 's32[1]{0}', space=sflag, size = 0x4, scoped, tag = 'scoped memory for tpu_custom_call.1']
    %18 = vsyncpa [#allocation4], 0
    %19 = vsyncpa [#allocation7], 0
    %20 = vsyncpa [#allocation5], 0
    %21 = vsyncpa [#allocation10], 0
    // Predicated region
    $region2: #{tpu_custom_call.1} parent=1 // pred_check
      _
    $region3: #{tpu_custom_call.1} parent=1 // pred_check_branch
      %23 = sbr.rel (0) target = $region5
    $region4: #{tpu_custom_call.1} parent=1 // pred_region
      _
    $region5: #{tpu_custom_call.1} parent=1 // pred_fallthru
      _
    // Predicated region
    $region6: #{tpu_custom_call.1} parent=1 // pred_check
      _
    $region7: #{tpu_custom_call.1} parent=1 // pred_check_branch
      %25 = sbr.rel (0) target = $region9
    $region8: #{tpu_custom_call.1} parent=1 // pred_region
      %27 = vsyncadd [#allocation4], 0
      %s29 = sshll.u32 %s1, 4
      %s30 = int_to_ptr.hbm [resolvable:$true] %s29
      %s31 = sshll.u32 [#allocation3], 4
      %s32 = int_to_ptr.vmem [resolvable:$true] %s31
      %34 = dma.hbm_to_vmem [thread:$0]  %s30, 16, %s32, [#allocation4]
    $region9: #{tpu_custom_call.1} parent=1 // pred_fallthru
      _
    // Predicated region
    $region10: #{tpu_custom_call.1} parent=1 // pred_check
      _
    $region11: #{tpu_custom_call.1} parent=1 // pred_check_branch
      %36 = sbr.rel (0) target = $region13
    $region12: #{tpu_custom_call.1} parent=1 // pred_region
      _
    $region13: #{tpu_custom_call.1} parent=1 // pred_fallthru
      _
    // Predicated region
    $region14: #{tpu_custom_call.1} parent=1 // pred_check
      _
    $region15: #{tpu_custom_call.1} parent=1 // pred_check_branch
      %38 = sbr.rel (0) target = $region17
    $region16: #{tpu_custom_call.1} parent=1 // pred_region
      _
    $region17: #{tpu_custom_call.1} parent=1 // pred_fallthru
      _
    // Predicated region
    $region18: #{tpu_custom_call.1} parent=1 // pred_check
      _
    $region19: #{tpu_custom_call.1} parent=1 // pred_check_branch
      %40 = sbr.rel (0) target = $region21
    $region20: #{tpu_custom_call.1} parent=1 // pred_region
      _
    $region21: #{tpu_custom_call.1} parent=1 // pred_fallthru
      _
    // Predicated region
    $region22: #{tpu_custom_call.1} parent=1 // pred_check
      _
    $region23: #{tpu_custom_call.1} parent=1 // pred_check_branch
      %42 = sbr.rel (0) target = $region25
    $region24: #{tpu_custom_call.1} parent=1 // pred_region
      _
    $region25: #{tpu_custom_call.1} parent=1 // pred_fallthru
      _
    // Predicated region
    $region26: #{tpu_custom_call.1} parent=1 // pred_check
      _
    $region27: #{tpu_custom_call.1} parent=1 // pred_check_branch
      %44 = sbr.rel (0) target = $region29
    $region28: #{tpu_custom_call.1} parent=1 // pred_region
      _
    $region29: #{tpu_custom_call.1} parent=1 // pred_fallthru
      _
    // Predicated region
    $region30: #{tpu_custom_call.1} parent=1 // pred_check
      _
    $region31: #{tpu_custom_call.1} parent=1 // pred_check_branch
      %46 = sbr.rel (0) target = $region33
    $region32: #{tpu_custom_call.1} parent=1 // pred_region
      _
    $region33: #{tpu_custom_call.1} parent=1 // pred_fallthru
      _
    // Predicated region
    $region34: #{tpu_custom_call.1} parent=1 // pred_check
      _
    $region35: #{tpu_custom_call.1} parent=1 // pred_check_branch
      %48 = sbr.rel (0) target = $region37
    $region36: #{tpu_custom_call.1} parent=1 // pred_region
      %50 = vsyncadd [#allocation7], 0
      %s52 = sshll.u32 %s8, 4
      %s53 = int_to_ptr.hbm [resolvable:$true] %s52
      %s54 = sshll.u32 [#allocation6], 4
      %s55 = int_to_ptr.vmem [resolvable:$true] %s54
      %57 = dma.hbm_to_vmem [thread:$0]  %s53, 16, %s55, [#allocation7]
    $region37: #{tpu_custom_call.1} parent=1 // pred_fallthru
      _
    // Predicated region
    $region38: #{tpu_custom_call.1} parent=1 // pred_check
      _
    $region39: #{tpu_custom_call.1} parent=1 // pred_check_branch
      %59 = sbr.rel (0) target = $region41
    $region40: #{tpu_custom_call.1} parent=1 // pred_region
      _
    $region41: #{tpu_custom_call.1} parent=1 // pred_fallthru
      _
    // Predicated region
    $region42: #{tpu_custom_call.1} parent=1 // pred_check
      _
    $region43: #{tpu_custom_call.1} parent=1 // pred_check_branch
      %61 = sbr.rel (0) target = $region45
    $region44: #{tpu_custom_call.1} parent=1 // pred_region
      _
    $region45: #{tpu_custom_call.1} parent=1 // pred_fallthru
      _
    // Predicated region
    $region46: #{tpu_custom_call.1} parent=1 // pred_check
      _
    $region47: #{tpu_custom_call.1} parent=1 // pred_check_branch
      %63 = sbr.rel (0) target = $region49
    $region48: #{tpu_custom_call.1} parent=1 // pred_region
      %65 = dma.done [#allocation4], 16
    $region49: #{tpu_custom_call.1} parent=1 // pred_fallthru
      _
    // Predicated region
    $region50: #{tpu_custom_call.1} parent=1 // pred_check
      _
    $region51: #{tpu_custom_call.1} parent=1 // pred_check_branch
      %67 = sbr.rel (0) target = $region53
    $region52: #{tpu_custom_call.1} parent=1 // pred_region
      %69 = dma.done [#allocation7], 16
    $region53: #{tpu_custom_call.1} parent=1 // pred_fallthru
      _
    %v71 = vld [vmem:[%s0] sm:$0xff]
    %v72 = vmul.f32 %v71, %v71
    %73 = vadd.xlane.f32.xlu0 %v72
    %v74 = vpop.xlane.xlu0 %73
    %v75 = vrcp.pop 128.0
    %v76 = vmul.f32 128.0, %v75
    %v77 = vsub.f32 1.0, %v76
    %v78 = vmul.f32 %v75, %v77
    %v79 = vadd.f32 %v75, %v78
    %vm80 = vweird.f32 %v75
    %v81 = vsel %vm80, %v75, %v79
    %v82 = vmul.f32 %v74, %v81
    %v83 = vadd.f32 %v82, 1e-06
    %v84 = vrsqrt.pop %v83
    %v85 = vmul.f32 %v84, %v83
    %v86 = vmul.f32 %v85, %v84
    %v87 = vmul.f32 0.5, %v86
    %v88 = vsub.f32 1.5, %v87
    %v89 = vmul.f32 %v84, %v88
    %vm90 = vweird.f32 %v83
    %vm91 = vweird.f32 %v84
    %vm92 = vmor %vm90, %vm91
    %v93 = vsel %vm92, %v84, %v89
    %v94 = vmul.f32 %v71, %v93
    %v95 = vld [vmem:[#allocation3] sm:$0x1]
    %v97 = vperm.slane %v95, 0
    %v99 = vmul.f32 %v94, %v97
    %v100 = vpack.c.bf16 %v99, %v99
    %v101 = vld [vmem:[%s2] sm:$0xff]
    %v102 = vld [vmem:[%s2 + $0x8] sm:$0xff]
    %v103 = vld [vmem:[%s2 + $0x10] sm:$0xff]
    %v104 = vld [vmem:[%s2 + $0x18] sm:$0xff]
    %v105 = vld [vmem:[%s2 + $0x20] sm:$0xff]
    %v106 = vld [vmem:[%s2 + $0x28] sm:$0xff]
    %v107 = vld [vmem:[%s2 + $0x30] sm:$0xff]
    %v108 = vld [vmem:[%s2 + $0x38] sm:$0xff]
    %v109 = vld [vmem:[%s2 + $0x40] sm:$0xff]
    %v110 = vld [vmem:[%s2 + $0x48] sm:$0xff]
    %v111 = vld [vmem:[%s2 + $0x50] sm:$0xff]
    %v112 = vld [vmem:[%s2 + $0x58] sm:$0xff]
    %v113 = vld [vmem:[%s2 + $0x60] sm:$0xff]
    %v114 = vld [vmem:[%s2 + $0x68] sm:$0xff]
    %v115 = vld [vmem:[%s2 + $0x70] sm:$0xff]
    %v116 = vld [vmem:[%s2 + $0x78] sm:$0xff]
    %v117 = vld [vmem:[%s2 + $0x80] sm:$0xff]
    %v118 = vld [vmem:[%s2 + $0x88] sm:$0xff]
    %v119 = vld [vmem:[%s2 + $0x90] sm:$0xff]
    %v120 = vld [vmem:[%s2 + $0x98] sm:$0xff]
    %v121 = vld [vmem:[%s2 + $0xa0] sm:$0xff]
    %v122 = vld [vmem:[%s2 + $0xa8] sm:$0xff]
    %v123 = vld [vmem:[%s2 + $0xb0] sm:$0xff]
    %v124 = vld [vmem:[%s2 + $0xb8] sm:$0xff]
    %v125 = vld [vmem:[%s2 + $0xc0] sm:$0xff]
    %v126 = vld [vmem:[%s2 + $0xc8] sm:$0xff]
    %v127 = vld [vmem:[%s2 + $0xd0] sm:$0xff]
    %v128 = vld [vmem:[%s2 + $0xd8] sm:$0xff]
    %v129 = vld [vmem:[%s2 + $0xe0] sm:$0xff]
    %v130 = vld [vmem:[%s2 + $0xe8] sm:$0xff]
    %v131 = vld [vmem:[%s2 + $0xf0] sm:$0xff]
    %v132 = vld [vmem:[%s2 + $0xf8] sm:$0xff]
    %v165 = vunpack.c.l.b16 %v101
    %v166 = vunpack.c.h.b16 %v101
    %v167 = vunpack.c.l.b16 %v102
    %v168 = vunpack.c.h.b16 %v102
    %v169 = vunpack.c.l.b16 %v103
    %v170 = vunpack.c.h.b16 %v103
    %v171 = vunpack.c.l.b16 %v104
    %v172 = vunpack.c.h.b16 %v104
    %v173 = vunpack.c.l.b16 %v105
    %v174 = vunpack.c.h.b16 %v105
    %v175 = vunpack.c.l.b16 %v106
    %v176 = vunpack.c.h.b16 %v106
    %v177 = vunpack.c.l.b16 %v107
    %v178 = vunpack.c.h.b16 %v107
    %v179 = vunpack.c.l.b16 %v108
    %v180 = vunpack.c.h.b16 %v108
    %v181 = vunpack.c.l.b16 %v109
    %v182 = vunpack.c.h.b16 %v109
    %v183 = vunpack.c.l.b16 %v110
    %v184 = vunpack.c.h.b16 %v110
    %v185 = vunpack.c.l.b16 %v111
    %v186 = vunpack.c.h.b16 %v111
    %v187 = vunpack.c.l.b16 %v112
    %v188 = vunpack.c.h.b16 %v112
    %v189 = vunpack.c.l.b16 %v113
    %v190 = vunpack.c.h.b16 %v113
    %v191 = vunpack.c.l.b16 %v114
    %v192 = vunpack.c.h.b16 %v114
    %v193 = vunpack.c.l.b16 %v115
    %v194 = vunpack.c.h.b16 %v115
    %v195 = vunpack.c.l.b16 %v116
    %v196 = vunpack.c.h.b16 %v116
    %v197 = vunpack.c.l.b16 %v117
    %v198 = vunpack.c.h.b16 %v117
    %v199 = vunpack.c.l.b16 %v118
    %v200 = vunpack.c.h.b16 %v118
    %v201 = vunpack.c.l.b16 %v119
    %v202 = vunpack.c.h.b16 %v119
    %v203 = vunpack.c.l.b16 %v120
    %v204 = vunpack.c.h.b16 %v120
    %v205 = vunpack.c.l.b16 %v121
    %v206 = vunpack.c.h.b16 %v121
    %v207 = vunpack.c.l.b16 %v122
    %v208 = vunpack.c.h.b16 %v122
    %v209 = vunpack.c.l.b16 %v123
    %v210 = vunpack.c.h.b16 %v123
    %v211 = vunpack.c.l.b16 %v124
    %v212 = vunpack.c.h.b16 %v124
    %v213 = vunpack.c.l.b16 %v125
    %v214 = vunpack.c.h.b16 %v125
    %v215 = vunpack.c.l.b16 %v126
    %v216 = vunpack.c.h.b16 %v126
    %v217 = vunpack.c.l.b16 %v127
    %v218 = vunpack.c.h.b16 %v127
    %v219 = vunpack.c.l.b16 %v128
    %v220 = vunpack.c.h.b16 %v128
    %v221 = vunpack.c.l.b16 %v129
    %v222 = vunpack.c.h.b16 %v129
    %v223 = vunpack.c.l.b16 %v130
    %v224 = vunpack.c.h.b16 %v130
    %v225 = vunpack.c.l.b16 %v131
    %v226 = vunpack.c.h.b16 %v131
    %v227 = vunpack.c.l.b16 %v132
    %v228 = vunpack.c.h.b16 %v132
    %v229 = vpack.c.b16 %v169, %v165
    %v230 = vpack.c.b16 %v170, %v166
    %v231 = vpack.c.b16 %v171, %v167
    %v232 = vpack.c.b16 %v172, %v168
    %v233 = vpack.c.b16 %v177, %v173
    %v234 = vpack.c.b16 %v178, %v174
    %v235 = vpack.c.b16 %v179, %v175
    %v236 = vpack.c.b16 %v180, %v176
    %v237 = vpack.c.b16 %v185, %v181
    %v238 = vpack.c.b16 %v186, %v182
    %v239 = vpack.c.b16 %v187, %v183
    %v240 = vpack.c.b16 %v188, %v184
    %v241 = vpack.c.b16 %v193, %v189
    %v242 = vpack.c.b16 %v194, %v190
    %v243 = vpack.c.b16 %v195, %v191
    %v244 = vpack.c.b16 %v196, %v192
    %v245 = vpack.c.b16 %v201, %v197
    %v246 = vpack.c.b16 %v202, %v198
    %v247 = vpack.c.b16 %v203, %v199
    %v248 = vpack.c.b16 %v204, %v200
    %v249 = vpack.c.b16 %v209, %v205
    %v250 = vpack.c.b16 %v210, %v206
    %v251 = vpack.c.b16 %v211, %v207
    %v252 = vpack.c.b16 %v212, %v208
    %v253 = vpack.c.b16 %v217, %v213
    %v254 = vpack.c.b16 %v218, %v214
    %v255 = vpack.c.b16 %v219, %v215
    %v256 = vpack.c.b16 %v220, %v216
    %v257 = vpack.c.b16 %v225, %v221
    %v258 = vpack.c.b16 %v226, %v222
    %v259 = vpack.c.b16 %v227, %v223
    %v260 = vpack.c.b16 %v228, %v224
    %293 = vmatpush.bf16.msra.mxu0 %v257
    %294 = vmatpush.bf16.msra.mxu0 %v253
    %295 = vmatpush.bf16.msra.mxu0 %v249
    %296 = vmatpush.bf16.msra.mxu0 %v245
    %297 = vmatpush.bf16.msra.mxu0 %v241
    %298 = vmatpush.bf16.msra.mxu0 %v237
    %299 = vmatpush.bf16.msra.mxu0 %v233
    %300 = vmatpush.bf16.msra.mxu0 %v229
    %301 = vmatmul.bf16.gmra.mxu0 %v100
    %v302 = vpop.f32.mrf.mxu0
    %v303 = vadd.f32 0.0, %v302
    %v304 = vpop.f32.mrf.mxu0
    %305 = vdwg.mxu0
    %306 = vmatpush.bf16.msra.mxu0 %v258
    %307 = vmatpush.bf16.msra.mxu0 %v254
    %308 = vmatpush.bf16.msra.mxu0 %v250
    %309 = vmatpush.bf16.msra.mxu0 %v246
    %310 = vmatpush.bf16.msra.mxu0 %v242
    %311 = vmatpush.bf16.msra.mxu0 %v238
    %312 = vmatpush.bf16.msra.mxu0 %v234
    %313 = vmatpush.bf16.msra.mxu0 %v230
    %314 = vmatmul.bf16.gmra.mxu0 %v100
    %v315 = vpop.f32.mrf.mxu0
    %v316 = vadd.f32 0.0, %v315
    %v317 = vpop.f32.mrf.mxu0
    %318 = vdwg.mxu0
    %319 = vmatpush.bf16.msra.mxu0 %v259
    %320 = vmatpush.bf16.msra.mxu0 %v255
    %321 = vmatpush.bf16.msra.mxu0 %v251
    %322 = vmatpush.bf16.msra.mxu0 %v247
    %323 = vmatpush.bf16.msra.mxu0 %v243
    %324 = vmatpush.bf16.msra.mxu0 %v239
    %325 = vmatpush.bf16.msra.mxu0 %v235
    %326 = vmatpush.bf16.msra.mxu0 %v231
    %327 = vmatmul.bf16.gmra.mxu0 %v100
    %v328 = vpop.f32.mrf.mxu0
    %v329 = vadd.f32 0.0, %v328
    %v330 = vpop.f32.mrf.mxu0
    %331 = vdwg.mxu0
    %332 = vmatpush.bf16.msra.mxu0 %v260
    %333 = vmatpush.bf16.msra.mxu0 %v256
    %334 = vmatpush.bf16.msra.mxu0 %v252
    %335 = vmatpush.bf16.msra.mxu0 %v248
    %336 = vmatpush.bf16.msra.mxu0 %v244
    %337 = vmatpush.bf16.msra.mxu0 %v240
    %338 = vmatpush.bf16.msra.mxu0 %v236
    %339 = vmatpush.bf16.msra.mxu0 %v232
    %340 = vmatmul.bf16.gmra.mxu0 %v100
    %v341 = vpop.f32.mrf.mxu0
    %v342 = vadd.f32 0.0, %v341
    %v343 = vpop.f32.mrf.mxu0
    %344 = vdwg.mxu0
    %v345 = vld [vmem:[%s3] sm:$0xff]
    %v346 = vmul.f32 %v303, %v345
    %v347 = vld [vmem:[%s4] sm:$0xff]
    %v348 = vmul.f32 %v316, %v347
    %v349 = vadd.f32 %v346, %v348
    %v350 = vld [vmem:[%s5] sm:$0xff]
    %v351 = vmul.f32 %v329, %v350
    %v352 = vld [vmem:[%s6] sm:$0xff]
    %354 = vrot.lane.b32.xlu0 %v352, 64
    %v355 = vpop.permute.xlu0 %354
    %v357 = vmul.f32 %v329, %v355
    %359 = vrot.lane.b32.xlu0 %v357, 64
    %v360 = vpop.permute.xlu0 %359
    %v362 = vadd.f32 %v351, %v360
    %v363 = vlaneseq
    %v364 = vshrl.u32 %v363, 7
    %v365 = vadd.s32 %v364, 8
    %vm366 = vcmp.lt.s32.totalorder %v364, 0
    %v367 = vsub.s32 0, %v364
    %v368 = vsel %vm366, %v367, %v364
    %v369 = vshrl.u32 %v368, 3
    %v370 = vand.u32 %v368, 7
    %v371 = vsub.s32 0, %v370
    %v372 = vsel %vm366, %v371, %v370
    %vm373 = vcmp.lt.s32.totalorder %v365, 0
    %v374 = vsub.s32 0, %v365
    %v375 = vsel %vm373, %v374, %v365
    %v376 = vshrl.u32 %v375, 3
    %v377 = vand.u32 %v375, 7
    %v378 = vsub.s32 0, %v377
    %v379 = vsel %vm373, %v378, %v377
    %vm380 = vcmp.ne.s32.totalorder %v372, 0
    %vm381 = vcmp.ne.s32.totalorder %v379, 0
    %vm382 = vcmp.lt.s32.totalorder %v372, 0
    %vm383 = vcmp.lt.s32.totalorder %v379, 0
    %vm384 = vmand %vm382, %vm380
    %vm385 = vmand %vm383, %vm381
    %v386 = vadd.s32 %v372, 8
    %v387 = vadd.s32 %v379, 8
    %v388 = vsel %vm384, %v386, %v372
    %v389 = vsel %vm385, %v387, %v379
    %v390 = vlaneseq
    %v391 = vand.u32 %v390, 127
    %vm392 = vcmp.le.s32.totalorder %v391, %v388
    %vm393 = vcmp.le.s32.totalorder %v391, %v389
    %v394 = vpack.c.bf16 %v362, %v362
    %v395 = vpack.c.bf16 %v342, %v342
    %397 = vrot.lane.b32.xlu0 %v349, 96
    %v398 = vpop.permute.xlu0 %397
    %v400 = vpack.c.bf16 %v398, %v349
    %vm401 = vcmask 261120
    %v403 = vsel %vm401, %v400, 0
    %v406 = vsel %vm401, %v394, 0
    %408 = vmatpush.bf16.xpose.msra.mxu0 0
    %409 = vmatpush.bf16.xpose.msra.mxu0 0
    %410 = vmatpush.bf16.xpose.msra.mxu0 0
    %411 = vmatpush.bf16.xpose.msra.mxu0 0
    %412 = vmatpush.bf16.xpose.msra.mxu0 0
    %413 = vmatpush.bf16.xpose.msra.mxu0 0
    %414 = vmatpush.bf16.xpose.msra.mxu0 0
    %415 = vmatpush.bf16.xpose.msra.mxu0 %v406
    %416 = vmatmul.bf16.gmra.mxu0 %v403
    %v417 = vpop.f32.mrf.mxu0
    %v418 = vadd.f32 0.0, %v417
    %v419 = vpop.f32.mrf.mxu0
    %v420 = vadd.f32 0.0, %v419
    %421 = vdwg.mxu0
    %v422 = vsel %vm392, %v418, -1e+30
    %v423 = vsel %vm393, %v420, -1e+30
    %vm424 = vcmask 64512
    %v425 = vsel %vm424, %v422, -inf
    %426 = vmax.xlane.f32.xlu0 %v425
    %v427 = vpop.xlane.xlu0 %426
    %v428 = vsel %vm424, %v423, -inf
    %429 = vmax.xlane.f32.xlu0 %v428
    %v430 = vpop.xlane.xlu0 %429
    %v431 = vsub.f32 %v422, %v427
    %v432 = vsub.f32 %v423, %v430
    %v433 = vmul.f32 %v431, 1.442695
    %v434 = vpow.pop %v433
    %v435 = vmul.f32 %v432, 1.442695
    %v436 = vpow.pop %v435
    %v437 = vsel %vm424, %v434, 0.0
    %438 = vadd.xlane.f32.xlu0 %v437
    %v439 = vpop.xlane.xlu0 %438
    %v440 = vsel %vm424, %v436, 0.0
    %441 = vadd.xlane.f32.xlu0 %v440
    %v442 = vpop.xlane.xlu0 %441
    %v443 = vrcp.pop %v439
    %v444 = vrcp.pop %v442
    %v445 = vmul.f32 %v434, %v443
    %v446 = vmul.f32 %v436, %v444
    %v447 = vpack.c.bf16 %v446, %v445
    %v449 = vsel %vm424, %v447, 0
    %vm451 = vcmask 1043456
    %v453 = vsel %vm451, %v395, 0
    %455 = vmatpush.bf16.msra.mxu0 0
    %456 = vmatpush.bf16.msra.mxu0 0
    %457 = vmatpush.bf16.msra.mxu0 0
    %458 = vmatpush.bf16.msra.mxu0 0
    %459 = vmatpush.bf16.msra.mxu0 0
    %460 = vmatpush.bf16.msra.mxu0 0
    %461 = vmatpush.bf16.msra.mxu0 0
    %462 = vmatpush.bf16.msra.mxu0 %v453
    %463 = vmatmul.bf16.gmra.mxu0 %v449
    %v464 = vpop.f32.mrf.mxu0
    %v465 = vadd.f32 0.0, %v464
    %v466 = vpop.f32.mrf.mxu0
    %v467 = vadd.f32 0.0, %v466
    %468 = vdwg.mxu0
    %469 = vst.msk [vmem:[#allocation2] sm:$0xff] %vm401, %v465
    %471 = vrot.lane.b32.xlu0 %v467, 32
    %v472 = vpop.permute.xlu0 %471
    %vm474 = vcmask 523520
    %475 = vst.msk [vmem:[#allocation2] sm:$0xff] %vm474, %v472
    %477 = vrot.lane.b32.xlu0 %v400, 64
    %v478 = vpop.permute.xlu0 %477
    %480 = vrot.lane.b32.xlu0 %v394, 96
    %v481 = vpop.permute.xlu0 %480
    %v483 = vsel %vm401, %v478, 0
    %v486 = vsel %vm401, %v481, 0
    %488 = vmatpush.bf16.xpose.msra.mxu0 0
    %489 = vmatpush.bf16.xpose.msra.mxu0 0
    %490 = vmatpush.bf16.xpose.msra.mxu0 0
    %491 = vmatpush.bf16.xpose.msra.mxu0 0
    %492 = vmatpush.bf16.xpose.msra.mxu0 0
    %493 = vmatpush.bf16.xpose.msra.mxu0 0
    %494 = vmatpush.bf16.xpose.msra.mxu0 0
    %495 = vmatpush.bf16.xpose.msra.mxu0 %v486
    %496 = vmatmul.bf16.gmra.mxu0 %v483
    %v497 = vpop.f32.mrf.mxu0
    %v498 = vadd.f32 0.0, %v497
    %v499 = vpop.f32.mrf.mxu0
    %v500 = vadd.f32 0.0, %v499
    %501 = vdwg.mxu0
    %v502 = vsel %vm392, %v498, -1e+30
    %v503 = vsel %vm393, %v500, -1e+30
    %v504 = vsel %vm424, %v502, -inf
    %505 = vmax.xlane.f32.xlu0 %v504
    %v506 = vpop.xlane.xlu0 %505
    %v507 = vsel %vm424, %v503, -inf
    %508 = vmax.xlane.f32.xlu0 %v507
    %v509 = vpop.xlane.xlu0 %508
    %v510 = vsub.f32 %v502, %v506
    %v511 = vsub.f32 %v503, %v509
    %v512 = vmul.f32 %v510, 1.442695
    %v513 = vpow.pop %v512
    %v514 = vmul.f32 %v511, 1.442695
    %v515 = vpow.pop %v514
    %v516 = vsel %vm424, %v513, 0.0
    %517 = vadd.xlane.f32.xlu0 %v516
    %v518 = vpop.xlane.xlu0 %517
    %v519 = vsel %vm424, %v515, 0.0
    %520 = vadd.xlane.f32.xlu0 %v519
    %v521 = vpop.xlane.xlu0 %520
    %v522 = vrcp.pop %v518
    %v523 = vrcp.pop %v521
    %v524 = vmul.f32 %v513, %v522
    %v525 = vmul.f32 %v515, %v523
    %v526 = vpack.c.bf16 %v525, %v524
    %528 = vrot.lane.b32.xlu0 %v395, 96
    %v529 = vpop.permute.xlu0 %528
    %v531 = vsel %vm424, %v526, 0
    %v534 = vsel %vm451, %v529, 0
    %536 = vmatpush.bf16.msra.mxu0 0
    %537 = vmatpush.bf16.msra.mxu0 0
    %538 = vmatpush.bf16.msra.mxu0 0
    %539 = vmatpush.bf16.msra.mxu0 0
    %540 = vmatpush.bf16.msra.mxu0 0
    %541 = vmatpush.bf16.msra.mxu0 0
    %542 = vmatpush.bf16.msra.mxu0 0
    %543 = vmatpush.bf16.msra.mxu0 %v534
    %544 = vmatmul.bf16.gmra.mxu0 %v531
    %v545 = vpop.f32.mrf.mxu0
    %v546 = vadd.f32 0.0, %v545
    %v547 = vpop.f32.mrf.mxu0
    %v548 = vadd.f32 0.0, %v547
    %549 = vdwg.mxu0
    %551 = vrot.lane.b32.xlu0 %v546, 64
    %v552 = vpop.permute.xlu0 %551
    %vm554 = vcmask 785920
    %555 = vst.msk [vmem:[#allocation2] sm:$0xff] %vm554, %v552
    %557 = vrot.lane.b32.xlu0 %v548, 96
    %v558 = vpop.permute.xlu0 %557
    %vm560 = vcmask 1048320
    %561 = vst.msk [vmem:[#allocation2] sm:$0xff] %vm560, %v558
    %v562 = vld [vmem:[#allocation2] sm:$0xff]
    %v563 = vpack.c.bf16 %v562, %v562
    %v564 = vld [vmem:[%s7] sm:$0xf]
    %v565 = vld [vmem:[%s7 + $0x4] sm:$0xf]
    %v566 = vld [vmem:[%s7 + $0x8] sm:$0xf]
    %v567 = vld [vmem:[%s7 + $0xc] sm:$0xf]
    %v568 = vld [vmem:[%s7 + $0x10] sm:$0xf]
    %v569 = vld [vmem:[%s7 + $0x14] sm:$0xf]
    %v570 = vld [vmem:[%s7 + $0x18] sm:$0xf]
    %v571 = vld [vmem:[%s7 + $0x1c] sm:$0xf]
    %v572 = vld [vmem:[%s7 + $0x20] sm:$0xf]
    %v573 = vld [vmem:[%s7 + $0x24] sm:$0xf]
    %v574 = vld [vmem:[%s7 + $0x28] sm:$0xf]
    %v575 = vld [vmem:[%s7 + $0x2c] sm:$0xf]
    %v576 = vld [vmem:[%s7 + $0x30] sm:$0xf]
    %v577 = vld [vmem:[%s7 + $0x34] sm:$0xf]
    %v578 = vld [vmem:[%s7 + $0x38] sm:$0xf]
    %v579 = vld [vmem:[%s7 + $0x3c] sm:$0xf]
    %v596 = vunpack.c.l.b16 %v564
    %v597 = vunpack.c.l.b16 %v565
    %v598 = vunpack.c.l.b16 %v566
    %v599 = vunpack.c.l.b16 %v567
    %v600 = vunpack.c.l.b16 %v568
    %v601 = vunpack.c.l.b16 %v569
    %v602 = vunpack.c.l.b16 %v570
    %v603 = vunpack.c.l.b16 %v571
    %v604 = vunpack.c.l.b16 %v572
    %v605 = vunpack.c.l.b16 %v573
    %v606 = vunpack.c.l.b16 %v574
    %v607 = vunpack.c.l.b16 %v575
    %v608 = vunpack.c.l.b16 %v576
    %v609 = vunpack.c.l.b16 %v577
    %v610 = vunpack.c.l.b16 %v578
    %v611 = vunpack.c.l.b16 %v579
    %v612 = vpack.c.b16 %v597, %v596
    %v613 = vpack.c.b16 %v599, %v598
    %v614 = vpack.c.b16 %v601, %v600
    %v615 = vpack.c.b16 %v603, %v602
    %v616 = vpack.c.b16 %v605, %v604
    %v617 = vpack.c.b16 %v607, %v606
    %v618 = vpack.c.b16 %v609, %v608
    %v619 = vpack.c.b16 %v611, %v610
    %628 = vmatpush.bf16.msra.mxu0 %v619
    %629 = vmatpush.bf16.msra.mxu0 %v618
    %630 = vmatpush.bf16.msra.mxu0 %v617
    %631 = vmatpush.bf16.msra.mxu0 %v616
    %632 = vmatpush.bf16.msra.mxu0 %v615
    %633 = vmatpush.bf16.msra.mxu0 %v614
    %634 = vmatpush.bf16.msra.mxu0 %v613
    %635 = vmatpush.bf16.msra.mxu0 %v612
    %636 = vmatmul.bf16.gmra.mxu0 %v563
    %v637 = vpop.f32.mrf.mxu0
    %v638 = vadd.f32 %v71, %v637
    %v639 = vpop.f32.mrf.mxu0
    %640 = vdwg.mxu0
    %641 = vst [vmem:[#allocation9] sm:$0xff] %v638
    %v642 = vmul.f32 %v638, %v638
    %643 = vadd.xlane.f32.xlu0 %v642
    %v644 = vpop.xlane.xlu0 %643
    %v645 = vmul.f32 %v644, %v81
    %v646 = vadd.f32 %v645, 1e-06
    %v647 = vrsqrt.pop %v646
    %v648 = vmul.f32 %v647, %v646
    %v649 = vmul.f32 %v648, %v647
    %v650 = vmul.f32 0.5, %v649
    %v651 = vsub.f32 1.5, %v650
    %v652 = vmul.f32 %v647, %v651
    %vm653 = vweird.f32 %v646
    %vm654 = vweird.f32 %v647
    %vm655 = vmor %vm653, %vm654
    %v656 = vsel %vm655, %v647, %v652
    %v657 = vmul.f32 %v638, %v656
    %v658 = vld [vmem:[#allocation6] sm:$0x1]
    %v660 = vperm.slane %v658, 0
    %v662 = vmul.f32 %v657, %v660
    %v663 = vpack.c.bf16 %v662, %v662
    %v664 = vld [vmem:[%s9] sm:$0xff]
    %v665 = vld [vmem:[%s9 + $0x8] sm:$0xff]
    %v666 = vld [vmem:[%s9 + $0x10] sm:$0xff]
    %v667 = vld [vmem:[%s9 + $0x18] sm:$0xff]
    %v668 = vld [vmem:[%s9 + $0x20] sm:$0xff]
    %v669 = vld [vmem:[%s9 + $0x28] sm:$0xff]
    %v670 = vld [vmem:[%s9 + $0x30] sm:$0xff]
    %v671 = vld [vmem:[%s9 + $0x38] sm:$0xff]
    %v672 = vld [vmem:[%s9 + $0x40] sm:$0xff]
    %v673 = vld [vmem:[%s9 + $0x48] sm:$0xff]
    %v674 = vld [vmem:[%s9 + $0x50] sm:$0xff]
    %v675 = vld [vmem:[%s9 + $0x58] sm:$0xff]
    %v676 = vld [vmem:[%s9 + $0x60] sm:$0xff]
    %v677 = vld [vmem:[%s9 + $0x68] sm:$0xff]
    %v678 = vld [vmem:[%s9 + $0x70] sm:$0xff]
    %v679 = vld [vmem:[%s9 + $0x78] sm:$0xff]
    %v680 = vld [vmem:[%s9 + $0x80] sm:$0xff]
    %v681 = vld [vmem:[%s9 + $0x88] sm:$0xff]
    %v682 = vld [vmem:[%s9 + $0x90] sm:$0xff]
    %v683 = vld [vmem:[%s9 + $0x98] sm:$0xff]
    %v684 = vld [vmem:[%s9 + $0xa0] sm:$0xff]
    %v685 = vld [vmem:[%s9 + $0xa8] sm:$0xff]
    %v686 = vld [vmem:[%s9 + $0xb0] sm:$0xff]
    %v687 = vld [vmem:[%s9 + $0xb8] sm:$0xff]
    %v688 = vld [vmem:[%s9 + $0xc0] sm:$0xff]
    %v689 = vld [vmem:[%s9 + $0xc8] sm:$0xff]
    %v690 = vld [vmem:[%s9 + $0xd0] sm:$0xff]
    %v691 = vld [vmem:[%s9 + $0xd8] sm:$0xff]
    %v692 = vld [vmem:[%s9 + $0xe0] sm:$0xff]
    %v693 = vld [vmem:[%s9 + $0xe8] sm:$0xff]
    %v694 = vld [vmem:[%s9 + $0xf0] sm:$0xff]
    %v695 = vld [vmem:[%s9 + $0xf8] sm:$0xff]
    %v728 = vunpack.c.l.b16 %v664
    %v729 = vunpack.c.h.b16 %v664
    %v730 = vunpack.c.l.b16 %v665
    %v731 = vunpack.c.h.b16 %v665
    %v732 = vunpack.c.l.b16 %v666
    %v733 = vunpack.c.h.b16 %v666
    %v734 = vunpack.c.l.b16 %v667
    %v735 = vunpack.c.h.b16 %v667
    %v736 = vunpack.c.l.b16 %v668
    %v737 = vunpack.c.h.b16 %v668
    %v738 = vunpack.c.l.b16 %v669
    %v739 = vunpack.c.h.b16 %v669
    %v740 = vunpack.c.l.b16 %v670
    %v741 = vunpack.c.h.b16 %v670
    %v742 = vunpack.c.l.b16 %v671
    %v743 = vunpack.c.h.b16 %v671
    %v744 = vunpack.c.l.b16 %v672
    %v745 = vunpack.c.h.b16 %v672
    %v746 = vunpack.c.l.b16 %v673
    %v747 = vunpack.c.h.b16 %v673
    %v748 = vunpack.c.l.b16 %v674
    %v749 = vunpack.c.h.b16 %v674
    %v750 = vunpack.c.l.b16 %v675
    %v751 = vunpack.c.h.b16 %v675
    %v752 = vunpack.c.l.b16 %v676
    %v753 = vunpack.c.h.b16 %v676
    %v754 = vunpack.c.l.b16 %v677
    %v755 = vunpack.c.h.b16 %v677
    %v756 = vunpack.c.l.b16 %v678
    %v757 = vunpack.c.h.b16 %v678
    %v758 = vunpack.c.l.b16 %v679
    %v759 = vunpack.c.h.b16 %v679
    %v760 = vunpack.c.l.b16 %v680
    %v761 = vunpack.c.h.b16 %v680
    %v762 = vunpack.c.l.b16 %v681
    %v763 = vunpack.c.h.b16 %v681
    %v764 = vunpack.c.l.b16 %v682
    %v765 = vunpack.c.h.b16 %v682
    %v766 = vunpack.c.l.b16 %v683
    %v767 = vunpack.c.h.b16 %v683
    %v768 = vunpack.c.l.b16 %v684
    %v769 = vunpack.c.h.b16 %v684
    %v770 = vunpack.c.l.b16 %v685
    %v771 = vunpack.c.h.b16 %v685
    %v772 = vunpack.c.l.b16 %v686
    %v773 = vunpack.c.h.b16 %v686
    %v774 = vunpack.c.l.b16 %v687
    %v775 = vunpack.c.h.b16 %v687
    %v776 = vunpack.c.l.b16 %v688
    %v777 = vunpack.c.h.b16 %v688
    %v778 = vunpack.c.l.b16 %v689
    %v779 = vunpack.c.h.b16 %v689
    %v780 = vunpack.c.l.b16 %v690
    %v781 = vunpack.c.h.b16 %v690
    %v782 = vunpack.c.l.b16 %v691
    %v783 = vunpack.c.h.b16 %v691
    %v784 = vunpack.c.l.b16 %v692
    %v785 = vunpack.c.h.b16 %v692
    %v786 = vunpack.c.l.b16 %v693
    %v787 = vunpack.c.h.b16 %v693
    %v788 = vunpack.c.l.b16 %v694
    %v789 = vunpack.c.h.b16 %v694
    %v790 = vunpack.c.l.b16 %v695
    %v791 = vunpack.c.h.b16 %v695
    %v792 = vpack.c.b16 %v732, %v728
    %v793 = vpack.c.b16 %v733, %v729
    %v794 = vpack.c.b16 %v734, %v730
    %v795 = vpack.c.b16 %v735, %v731
    %v796 = vpack.c.b16 %v740, %v736
    %v797 = vpack.c.b16 %v741, %v737
    %v798 = vpack.c.b16 %v742, %v738
    %v799 = vpack.c.b16 %v743, %v739
    %v800 = vpack.c.b16 %v748, %v744
    %v801 = vpack.c.b16 %v749, %v745
    %v802 = vpack.c.b16 %v750, %v746
    %v803 = vpack.c.b16 %v751, %v747
    %v804 = vpack.c.b16 %v756, %v752
    %v805 = vpack.c.b16 %v757, %v753
    %v806 = vpack.c.b16 %v758, %v754
    %v807 = vpack.c.b16 %v759, %v755
    %v808 = vpack.c.b16 %v764, %v760
    %v809 = vpack.c.b16 %v765, %v761
    %v810 = vpack.c.b16 %v766, %v762
    %v811 = vpack.c.b16 %v767, %v763
    %v812 = vpack.c.b16 %v772, %v768
    %v813 = vpack.c.b16 %v773, %v769
    %v814 = vpack.c.b16 %v774, %v770
    %v815 = vpack.c.b16 %v775, %v771
    %v816 = vpack.c.b16 %v780, %v776
    %v817 = vpack.c.b16 %v781, %v777
    %v818 = vpack.c.b16 %v782, %v778
    %v819 = vpack.c.b16 %v783, %v779
    %v820 = vpack.c.b16 %v788, %v784
    %v821 = vpack.c.b16 %v789, %v785
    %v822 = vpack.c.b16 %v790, %v786
    %v823 = vpack.c.b16 %v791, %v787
    %856 = vmatpush.bf16.msra.mxu0 %v820
    %857 = vmatpush.bf16.msra.mxu0 %v816
    %858 = vmatpush.bf16.msra.mxu0 %v812
    %859 = vmatpush.bf16.msra.mxu0 %v808
    %860 = vmatpush.bf16.msra.mxu0 %v804
    %861 = vmatpush.bf16.msra.mxu0 %v800
    %862 = vmatpush.bf16.msra.mxu0 %v796
    %863 = vmatpush.bf16.msra.mxu0 %v792
    %864 = vmatmul.bf16.gmra.mxu0 %v663
    %v865 = vpop.f32.mrf.mxu0
    %v866 = vadd.f32 0.0, %v865
    %v867 = vpop.f32.mrf.mxu0
    %868 = vdwg.mxu0
    %869 = vmatpush.bf16.msra.mxu0 %v821
    %870 = vmatpush.bf16.msra.mxu0 %v817
    %871 = vmatpush.bf16.msra.mxu0 %v813
    %872 = vmatpush.bf16.msra.mxu0 %v809
    %873 = vmatpush.bf16.msra.mxu0 %v805
    %874 = vmatpush.bf16.msra.mxu0 %v801
    %875 = vmatpush.bf16.msra.mxu0 %v797
    %876 = vmatpush.bf16.msra.mxu0 %v793
    %877 = vmatmul.bf16.gmra.mxu0 %v663
    %v878 = vpop.f32.mrf.mxu0
    %v879 = vadd.f32 0.0, %v878
    %v880 = vpop.f32.mrf.mxu0
    %881 = vdwg.mxu0
    %882 = vmatpush.bf16.msra.mxu0 %v822
    %883 = vmatpush.bf16.msra.mxu0 %v818
    %884 = vmatpush.bf16.msra.mxu0 %v814
    %885 = vmatpush.bf16.msra.mxu0 %v810
    %886 = vmatpush.bf16.msra.mxu0 %v806
    %887 = vmatpush.bf16.msra.mxu0 %v802
    %888 = vmatpush.bf16.msra.mxu0 %v798
    %889 = vmatpush.bf16.msra.mxu0 %v794
    %890 = vmatmul.bf16.gmra.mxu0 %v663
    %v891 = vpop.f32.mrf.mxu0
    %v892 = vadd.f32 0.0, %v891
    %v893 = vpop.f32.mrf.mxu0
    %894 = vdwg.mxu0
    %895 = vmatpush.bf16.msra.mxu0 %v823
    %896 = vmatpush.bf16.msra.mxu0 %v819
    %897 = vmatpush.bf16.msra.mxu0 %v815
    %898 = vmatpush.bf16.msra.mxu0 %v811
    %899 = vmatpush.bf16.msra.mxu0 %v807
    %900 = vmatpush.bf16.msra.mxu0 %v803
    %901 = vmatpush.bf16.msra.mxu0 %v799
    %902 = vmatpush.bf16.msra.mxu0 %v795
    %903 = vmatmul.bf16.gmra.mxu0 %v663
    %v904 = vpop.f32.mrf.mxu0
    %v905 = vadd.f32 0.0, %v904
    %v906 = vpop.f32.mrf.mxu0
    %907 = vdwg.mxu0
    %v908 = vxor.u32 %v866, 2147483648
    %v909 = vxor.u32 %v879, 2147483648
    %v910 = vmul.f32 %v908, 1.442695
    %v911 = vpow.pop %v910
    %v912 = vmul.f32 %v909, 1.442695
    %v913 = vpow.pop %v912
    %v914 = vadd.f32 %v911, 1.0
    %v915 = vadd.f32 %v913, 1.0
    %v916 = vrcp.pop %v914
    %v917 = vmul.f32 %v914, %v916
    %v918 = vsub.f32 1.0, %v917
    %v919 = vmul.f32 %v916, %v918
    %v920 = vadd.f32 %v916, %v919
    %vm921 = vweird.f32 %v914
    %vm922 = vweird.f32 %v916
    %vm923 = vmor %vm921, %vm922
    %v924 = vsel %vm923, %v916, %v920
    %v925 = vand.u32 2147483647, %v914
    %vm926 = vcmp.eq.f32.partialorder %v925, 8.507059e+37
    %v927 = vand.u32 %v914, 2147483648
    %v928 = vor.u32 1.1754944e-38, %v927
    %v929 = vsel %vm926, %v928, %v924
    %v930 = vmul.f32 1.0, %v929
    %v931 = vrcp.pop %v915
    %v932 = vmul.f32 %v915, %v931
    %v933 = vsub.f32 1.0, %v932
    %v934 = vmul.f32 %v931, %v933
    %v935 = vadd.f32 %v931, %v934
    %vm936 = vweird.f32 %v915
    %vm937 = vweird.f32 %v931
    %vm938 = vmor %vm936, %vm937
    %v939 = vsel %vm938, %v931, %v935
    %v940 = vand.u32 2147483647, %v915
    %vm941 = vcmp.eq.f32.partialorder %v940, 8.507059e+37
    %v942 = vand.u32 %v915, 2147483648
    %v943 = vor.u32 1.1754944e-38, %v942
    %v944 = vsel %vm941, %v943, %v939
    %v945 = vmul.f32 1.0, %v944
    %v946 = vmul.f32 %v866, %v930
    %v947 = vmul.f32 %v879, %v945
    %v948 = vmul.f32 %v946, %v892
    %v949 = vmul.f32 %v947, %v905
    %v950 = vpack.c.bf16 %v948, %v948
    %v951 = vpack.c.bf16 %v949, %v949
    %v952 = vld [vmem:[%s10] sm:$0xf]
    %v953 = vld [vmem:[%s10 + $0x4] sm:$0xf]
    %v954 = vld [vmem:[%s10 + $0x8] sm:$0xf]
    %v955 = vld [vmem:[%s10 + $0xc] sm:$0xf]
    %v956 = vld [vmem:[%s10 + $0x10] sm:$0xf]
    %v957 = vld [vmem:[%s10 + $0x14] sm:$0xf]
    %v958 = vld [vmem:[%s10 + $0x18] sm:$0xf]
    %v959 = vld [vmem:[%s10 + $0x1c] sm:$0xf]
    %v960 = vld [vmem:[%s10 + $0x20] sm:$0xf]
    %v961 = vld [vmem:[%s10 + $0x24] sm:$0xf]
    %v962 = vld [vmem:[%s10 + $0x28] sm:$0xf]
    %v963 = vld [vmem:[%s10 + $0x2c] sm:$0xf]
    %v964 = vld [vmem:[%s10 + $0x30] sm:$0xf]
    %v965 = vld [vmem:[%s10 + $0x34] sm:$0xf]
    %v966 = vld [vmem:[%s10 + $0x38] sm:$0xf]
    %v967 = vld [vmem:[%s10 + $0x3c] sm:$0xf]
    %v968 = vld [vmem:[%s10 + $0x40] sm:$0xf]
    %v969 = vld [vmem:[%s10 + $0x44] sm:$0xf]
    %v970 = vld [vmem:[%s10 + $0x48] sm:$0xf]
    %v971 = vld [vmem:[%s10 + $0x4c] sm:$0xf]
    %v972 = vld [vmem:[%s10 + $0x50] sm:$0xf]
    %v973 = vld [vmem:[%s10 + $0x54] sm:$0xf]
    %v974 = vld [vmem:[%s10 + $0x58] sm:$0xf]
    %v975 = vld [vmem:[%s10 + $0x5c] sm:$0xf]
    %v976 = vld [vmem:[%s10 + $0x60] sm:$0xf]
    %v977 = vld [vmem:[%s10 + $0x64] sm:$0xf]
    %v978 = vld [vmem:[%s10 + $0x68] sm:$0xf]
    %v979 = vld [vmem:[%s10 + $0x6c] sm:$0xf]
    %v980 = vld [vmem:[%s10 + $0x70] sm:$0xf]
    %v981 = vld [vmem:[%s10 + $0x74] sm:$0xf]
    %v982 = vld [vmem:[%s10 + $0x78] sm:$0xf]
    %v983 = vld [vmem:[%s10 + $0x7c] sm:$0xf]
    %v1016 = vunpack.c.l.b16 %v952
    %v1017 = vunpack.c.l.b16 %v953
    %v1018 = vunpack.c.l.b16 %v954
    %v1019 = vunpack.c.l.b16 %v955
    %v1020 = vunpack.c.l.b16 %v956
    %v1021 = vunpack.c.l.b16 %v957
    %v1022 = vunpack.c.l.b16 %v958
    %v1023 = vunpack.c.l.b16 %v959
    %v1024 = vunpack.c.l.b16 %v960
    %v1025 = vunpack.c.l.b16 %v961
    %v1026 = vunpack.c.l.b16 %v962
    %v1027 = vunpack.c.l.b16 %v963
    %v1028 = vunpack.c.l.b16 %v964
    %v1029 = vunpack.c.l.b16 %v965
    %v1030 = vunpack.c.l.b16 %v966
    %v1031 = vunpack.c.l.b16 %v967
    %v1032 = vunpack.c.l.b16 %v968
    %v1033 = vunpack.c.l.b16 %v969
    %v1034 = vunpack.c.l.b16 %v970
    %v1035 = vunpack.c.l.b16 %v971
    %v1036 = vunpack.c.l.b16 %v972
    %v1037 = vunpack.c.l.b16 %v973
    %v1038 = vunpack.c.l.b16 %v974
    %v1039 = vunpack.c.l.b16 %v975
    %v1040 = vunpack.c.l.b16 %v976
    %v1041 = vunpack.c.l.b16 %v977
    %v1042 = vunpack.c.l.b16 %v978
    %v1043 = vunpack.c.l.b16 %v979
    %v1044 = vunpack.c.l.b16 %v980
    %v1045 = vunpack.c.l.b16 %v981
    %v1046 = vunpack.c.l.b16 %v982
    %v1047 = vunpack.c.l.b16 %v983
    %v1048 = vpack.c.b16 %v1017, %v1016
    %v1049 = vpack.c.b16 %v1019, %v1018
    %v1050 = vpack.c.b16 %v1021, %v1020
    %v1051 = vpack.c.b16 %v1023, %v1022
    %v1052 = vpack.c.b16 %v1025, %v1024
    %v1053 = vpack.c.b16 %v1027, %v1026
    %v1054 = vpack.c.b16 %v1029, %v1028
    %v1055 = vpack.c.b16 %v1031, %v1030
    %v1056 = vpack.c.b16 %v1033, %v1032
    %v1057 = vpack.c.b16 %v1035, %v1034
    %v1058 = vpack.c.b16 %v1037, %v1036
    %v1059 = vpack.c.b16 %v1039, %v1038
    %v1060 = vpack.c.b16 %v1041, %v1040
    %v1061 = vpack.c.b16 %v1043, %v1042
    %v1062 = vpack.c.b16 %v1045, %v1044
    %v1063 = vpack.c.b16 %v1047, %v1046
    %1080 = vmatpush.bf16.msra.mxu0 %v1055
    %1081 = vmatpush.bf16.msra.mxu0 %v1054
    %1082 = vmatpush.bf16.msra.mxu0 %v1053
    %1083 = vmatpush.bf16.msra.mxu0 %v1052
    %1084 = vmatpush.bf16.msra.mxu0 %v1051
    %1085 = vmatpush.bf16.msra.mxu0 %v1050
    %1086 = vmatpush.bf16.msra.mxu0 %v1049
    %1087 = vmatpush.bf16.msra.mxu0 %v1048
    %1088 = vmatmul.bf16.gmra.mxu0 %v950
    %v1089 = vpop.f32.mrf.mxu0
    %v1090 = vadd.f32 0.0, %v1089
    %v1091 = vpop.f32.mrf.mxu0
    %1092 = vdwg.mxu0
    %1093 = vmatpush.bf16.msra.mxu0 %v1063
    %1094 = vmatpush.bf16.msra.mxu0 %v1062
    %1095 = vmatpush.bf16.msra.mxu0 %v1061
    %1096 = vmatpush.bf16.msra.mxu0 %v1060
    %1097 = vmatpush.bf16.msra.mxu0 %v1059
    %1098 = vmatpush.bf16.msra.mxu0 %v1058
    %1099 = vmatpush.bf16.msra.mxu0 %v1057
    %1100 = vmatpush.bf16.msra.mxu0 %v1056
    %1101 = vmatmul.bf16.gmra.mxu0 %v951
    %v1102 = vpop.f32.mrf.mxu0
    %v1103 = vadd.f32 %v1090, %v1102
    %v1104 = vpop.f32.mrf.mxu0
    %1105 = vdwg.mxu0
    %1106 = vst [vmem:[#allocation8] sm:$0xff] %v1103
    // Predicated region
    $region54: #{tpu_custom_call.1} parent=1 // pred_check
      _
    $region55: #{tpu_custom_call.1} parent=1 // pred_check_branch
      %1108 = sbr.rel (0) target = $region57
    $region56: #{tpu_custom_call.1} parent=1 // pred_region
      %1110 = vsyncadd [#allocation5], 0
      %s1112 = sshll.u32 [#allocation8], 4
      %s1113 = int_to_ptr.vmem [resolvable:$true] %s1112
      %s1114 = sshll.u32 %s11, 4
      %s1115 = int_to_ptr.hbm [resolvable:$true] %s1114
      %1117 = dma.vmem_to_hbm [thread:$0]  %s1113, 128, %s1115, [#allocation5]
    $region57: #{tpu_custom_call.1} parent=1 // pred_fallthru
      _
    // Predicated region
    $region58: #{tpu_custom_call.1} parent=1 // pred_check
      _
    $region59: #{tpu_custom_call.1} parent=1 // pred_check_branch
      %1119 = sbr.rel (0) target = $region61
    $region60: #{tpu_custom_call.1} parent=1 // pred_region
      %1121 = vsyncadd [#allocation10], 0
      %s1123 = sshll.u32 [#allocation9], 4
      %s1124 = int_to_ptr.vmem [resolvable:$true] %s1123
      %s1125 = sshll.u32 %s12, 4
      %s1126 = int_to_ptr.hbm [resolvable:$true] %s1125
      %1128 = dma.vmem_to_hbm [thread:$0]  %s1124, 128, %s1126, [#allocation10]
    $region61: #{tpu_custom_call.1} parent=1 // pred_fallthru
      _
    // Predicated region
    $region62: #{tpu_custom_call.1} parent=1 // pred_check
      _
    $region63: #{tpu_custom_call.1} parent=1 // pred_check_branch
      %1130 = sbr.rel (0) target = $region65
    $region64: #{tpu_custom_call.1} parent=1 // pred_region
      %1132 = dma.done [#allocation5], 128
    $region65: #{tpu_custom_call.1} parent=1 // pred_fallthru
      _
    // Predicated region
    $region66: #{tpu_custom_call.1} parent=1 // pred_check
      _
    $region67: #{tpu_custom_call.1} parent=1 // pred_check_branch
      %1134 = sbr.rel (0) target = $region69
    $region68: #{tpu_custom_call.1} parent=1 // pred_region
      %1136 = dma.done [#allocation10], 128
    $region69: #{tpu_custom_call.1} parent=1 // pred_fallthru
      _
    %1137 = vsyncpa [#allocation4], 1
    %1138 = vsyncpa [#allocation7], 1
    %1139 = vsyncpa [#allocation5], 1
    %1140 = vsyncpa [#allocation10], 1

</llo_original>
